<compile_context>
chip_gen: v7x
topology: tpu7x:2x2x1
jax: 0.10.0
libtpu: 0.0.40
codegen_flags: <defaults>
</compile_context>

<pallas_src>
import math

import jax
import jax.numpy as jnp
from jax.experimental import pallas as pl
from jax.experimental.pallas import tpu as pltpu


def _attn_kernel(q_ref, k_ref, v_ref, mask_ref, o_ref):
    # q/k: (S, D); v: (S, Dv); mask: (S, S); o: (S, Dv) — one batch*head slice.
    scale = 1.0 / math.sqrt(q_ref.shape[-1])

    # Fold the scale into q (S*D muls instead of S*S) and cast both matmul
    # operands to bf16 at the MXU boundary; accumulate in f32.
    q = (q_ref[...] * scale).astype(jnp.bfloat16)
    k = k_ref[...].astype(jnp.bfloat16)

    # scores = (q * scale) @ k^T — contract on D directly (no XLU transpose)
    s = jnp.einsum("qd,kd->qk", q, k,
                   preferred_element_type=jnp.float32)          # (S, S) f32
    s = s + mask_ref[...]                                        # additive mask

    # numerically-stable softmax along the last axis, kept in f32
    s_max = jnp.max(s, axis=-1, keepdims=True)
    p = jnp.exp(s - s_max)
    denom = jnp.sum(p, axis=-1, keepdims=True)
    attn = p * pl.reciprocal(denom, approx=True)                 # EUP vrcp slot

    # output = softmax(scores) @ V — bf16 operands, f32 accumulate, f32 store
    o = jnp.einsum("qk,kd->qd",
                   attn.astype(jnp.bfloat16),
                   v_ref[...].astype(jnp.bfloat16),
                   preferred_element_type=jnp.float32)           # (S, Dv)
    # TODO(synk): output last dim (Dv=56) < 128 lanes -> masked partial stores;
    # per-head softmax weights prevent lane-concatenating heads in one matmul.
    o_ref[...] = o.astype(o_ref.dtype)


def attention(q, k12, v, mask):
    """q, k12: (..., S, D); v: (..., S, Dv); mask: (1, S, S) -> (..., S, Dv)."""
    S, D = q.shape[-2], q.shape[-1]
    Dv = v.shape[-1]
    lead = q.shape[:-2]
    assert k12.shape == q.shape
    assert v.shape == lead + (S, Dv)
    assert mask.shape[-2:] == (S, S)

    # Flatten all leading (batch, head) dims so one pallas_call covers every
    # head — amortizes launch/DMA overhead and feeds the batch grid axis.
    n = 1
    for d_ in lead:
        n *= d_
    qf = q.reshape(n, S, D)
    kf = k12.reshape(n, S, D)
    vf = v.reshape(n, S, Dv)
    m2 = mask.reshape(S, S)  # broadcasts over all leading dims

    # advisory cost hint for XLA's scheduler
    flops = 2 * n * S * S * D + 2 * n * S * S * Dv   # two matmuls
    bytes_accessed = 4 * (2 * n * S * D + n * S * Dv + S * S + n * S * Dv)
    transcendentals = n * S * S                      # exp per score element

    # TODO(synk): for production-sized S (full (S,S) scores live in VMEM) the
    # cutoff is generation-specific (v7x: 64 MiB physical vs 128 MiB on
    # v5e/v6e); past it, rewrite flash-style with a KV grid axis ("arbitrary")
    # and a VMEM accumulator, and re-derive vmem_limit_bytes per generation.
    out = pl.pallas_call(
        _attn_kernel,
        out_shape=jax.ShapeDtypeStruct((n, S, Dv), q.dtype),
        grid_spec=pltpu.PrefetchScalarGridSpec(
            num_scalar_prefetch=0,
            grid=(n,),  # one (batch*head) slice per grid step
            in_specs=[
                pl.BlockSpec((pl.Squeezed(), S, D), lambda i: (i, 0, 0)),   # q
                pl.BlockSpec((pl.Squeezed(), S, D), lambda i: (i, 0, 0)),   # k12
                pl.BlockSpec((pl.Squeezed(), S, Dv), lambda i: (i, 0, 0)),  # V
                pl.BlockSpec((S, S), lambda i: (0, 0)),  # mask, resident
            ],
            out_specs=pl.BlockSpec((pl.Squeezed(), S, Dv), lambda i: (i, 0, 0)),
        ),
        compiler_params=pltpu.CompilerParams(
            # batch axis is embarrassingly parallel -> shards across the two
            # TensorCores on v7x; neutral on single-TC v5e/v6e.
            dimension_semantics=("parallel",),
            # explicit and safe on all generations at these shapes; raise
            # toward 128 MiB on v6e (64 MiB on v7x) only for much larger S.
            vmem_limit_bytes=32 * 1024 * 1024,
        ),
        cost_estimate=pl.CostEstimate(
            flops=flops,
            bytes_accessed=bytes_accessed,
            transcendentals=transcendentals,
        ),
    )(qf, kf, vf, m2)
    return out.reshape(*lead, S, Dv)


def _reference(q, k12, v, mask):
    d = q.shape[-1]
    s = jnp.matmul(q, jnp.swapaxes(k12, -2, -1)) / math.sqrt(d)
    s = s + mask
    w = jax.nn.softmax(s, axis=-1)
    return jnp.matmul(w, v)


if __name__ == "__main__":
    # Small version of the module's shapes: V is (1, 64, 56, 56) in the spec;
    # use 4 heads instead of 64, keep S = Dq = Dv = 56.
    B, H, S, D = 1, 4, 56, 56
    key = jax.random.PRNGKey(0)
    kq, kk, kv, km = jax.random.split(key, 4)

    q = jax.random.normal(kq, (B, H, S, D), dtype=jnp.float32)
    k12 = jax.random.normal(kk, (B, H, S, D), dtype=jnp.float32)
    V = jax.random.normal(kv, (B, H, S, D), dtype=jnp.float32)
    # additive mask analogous to the script's (rand > 0.7)-style mask
    mask = jnp.where(
        jax.random.uniform(km, (1, S, S)) > 0.7, -1e9, 0.0
    ).astype(jnp.float32)

    out = attention(q, k12, V, mask)
    jax.block_until_ready(out)

    ref = _reference(q, k12, V, mask)
    assert out.shape == (B, H, S, D)
    # tolerance relaxed for bf16 MXU operands + approximate (EUP) reciprocal
    assert jnp.allclose(out, ref, atol=5e-2, rtol=5e-2)

    print("KERNEL_OK")
</pallas_src>

<mosaic_0001>
module attributes {stable_mosaic.version = 11 : i64} {
  func.func @_attn_kernel(%arg0: i32, %arg1: memref<1x56x56xf32, #tpu.memory_space<vmem>>, %arg2: memref<1x56x56xf32, #tpu.memory_space<vmem>>, %arg3: memref<1x56x56xf32, #tpu.memory_space<vmem>>, %arg4: memref<56x56xf32, #tpu.memory_space<vmem>>, %arg5: memref<1x56x56xf32, #tpu.memory_space<vmem>>) attributes {dimension_semantics = [#tpu.dimension_semantics<parallel>], iteration_bounds = array<i64: 4>, scalar_prefetch = 0 : i64, scratch_operands = 0 : i64, tpu.core_type = #tpu.core_type<tc>, window_params = [{transform_indices = @transform_0, window_bounds = array<i64: 1, 56, 56>}, {transform_indices = @transform_1, window_bounds = array<i64: 1, 56, 56>}, {transform_indices = @transform_2, window_bounds = array<i64: 1, 56, 56>}, {pipeline_mode = #tpu.pipeline_mode<synchronous>, transform_indices = @transform_3, window_bounds = array<i64: 56, 56>}, {transform_indices = @transform_4, window_bounds = array<i64: 1, 56, 56>}]} {
    %c0 = arith.constant 0 : index
    %c0_0 = arith.constant 0 : index
    %c0_1 = arith.constant 0 : index
    %0 = vector.load %arg1[%c0, %c0_0, %c0_1] : memref<1x56x56xf32, #tpu.memory_space<vmem>>, vector<1x56x56xf32>
    %1 = vector.shape_cast %0 : vector<1x56x56xf32> to vector<56x56xf32>
    %cst = arith.constant 0.133630618 : f32
    %2 = vector.broadcast %cst : f32 to vector<56x56xf32>
    %3 = arith.mulf %1, %2 : vector<56x56xf32>
    %4 = arith.truncf %3 : vector<56x56xf32> to vector<56x56xbf16>
    %c0_2 = arith.constant 0 : index
    %c0_3 = arith.constant 0 : index
    %c0_4 = arith.constant 0 : index
    %5 = vector.load %arg2[%c0_2, %c0_3, %c0_4] : memref<1x56x56xf32, #tpu.memory_space<vmem>>, vector<1x56x56xf32>
    %6 = vector.shape_cast %5 : vector<1x56x56xf32> to vector<56x56xf32>
    %7 = arith.truncf %6 : vector<56x56xf32> to vector<56x56xbf16>
    "tpu.trace_start"() <{level = 10 : i32, message = "qd,kd->qk"}> : () -> ()
    %cst_5 = arith.constant dense<0.000000e+00> : vector<56x56xf32>
    %8 = tpu.matmul %4, %7, %cst_5 {dimension_numbers = #tpu.dot_dimension_numbers<[1], [1], [0], [0], [0, 0, 1, 0], [], []>} : vector<56x56xbf16>, vector<56x56xbf16>, vector<56x56xf32> -> vector<56x56xf32>
    "tpu.trace_stop"() : () -> ()
    %c0_6 = arith.constant 0 : index
    %c0_7 = arith.constant 0 : index
    %9 = vector.load %arg4[%c0_6, %c0_7] : memref<56x56xf32, #tpu.memory_space<vmem>>, vector<56x56xf32>
    %10 = arith.addf %8, %9 : vector<56x56xf32>
    %cst_8 = arith.constant dense<0xFF800000> : vector<56xf32>
    %11 = vector.multi_reduction <maximumf>, %10, %cst_8 [1] : vector<56x56xf32> to vector<56xf32>
    %12 = vector.shape_cast %11 : vector<56xf32> to vector<56x1xf32>
    %13 = vector.broadcast %12 : vector<56x1xf32> to vector<56x56xf32>
    %14 = arith.subf %10, %13 : vector<56x56xf32>
    %15 = math.exp %14 : vector<56x56xf32>
    %cst_9 = arith.constant dense<0.000000e+00> : vector<56xf32>
    %16 = vector.multi_reduction <add>, %15, %cst_9 [1] : vector<56x56xf32> to vector<56xf32>
    %17 = vector.shape_cast %16 : vector<56xf32> to vector<56x1xf32>
    %18 = tpu.reciprocal %17 {approx = true} : vector<56x1xf32> -> vector<56x1xf32>
    %19 = vector.broadcast %18 : vector<56x1xf32> to vector<56x56xf32>
    %20 = arith.mulf %15, %19 : vector<56x56xf32>
    %21 = arith.truncf %20 : vector<56x56xf32> to vector<56x56xbf16>
    %c0_10 = arith.constant 0 : index
    %c0_11 = arith.constant 0 : index
    %c0_12 = arith.constant 0 : index
    %22 = vector.load %arg3[%c0_10, %c0_11, %c0_12] : memref<1x56x56xf32, #tpu.memory_space<vmem>>, vector<1x56x56xf32>
    %23 = vector.shape_cast %22 : vector<1x56x56xf32> to vector<56x56xf32>
    %24 = arith.truncf %23 : vector<56x56xf32> to vector<56x56xbf16>
    "tpu.trace_start"() <{level = 10 : i32, message = "qk,kd->qd"}> : () -> ()
    %cst_13 = arith.constant dense<0.000000e+00> : vector<56x56xf32>
    %25 = tpu.matmul %21, %24, %cst_13 {dimension_numbers = #tpu.dot_dimension_numbers<[1], [0], [0], [1], [0, 0, 1, 1], [], []>} : vector<56x56xbf16>, vector<56x56xbf16>, vector<56x56xf32> -> vector<56x56xf32>
    "tpu.trace_stop"() : () -> ()
    %c0_14 = arith.constant 0 : index
    %c0_15 = arith.constant 0 : index
    %c0_16 = arith.constant 0 : index
    %26 = vector.load %arg5[%c0_14, %c0_15, %c0_16] : memref<1x56x56xf32, #tpu.memory_space<vmem>>, vector<1x56x56xf32>
    %27 = vector.shape_cast %26 : vector<1x56x56xf32> to vector<56x56xf32>
    %28 = vector.shape_cast %25 : vector<56x56xf32> to vector<1x56x56xf32>
    tpu.vector_store %arg5[%c0_14, %c0_15, %c0_16], %28 {strides = array<i32>} : memref<1x56x56xf32, #tpu.memory_space<vmem>>, vector<1x56x56xf32>,
    return
  }
  func.func @transform_0(%arg0: i32) -> (i32, i32, i32) {
    %c0_i32 = arith.constant 0 : i32
    %c0_i32_0 = arith.constant 0 : i32
    %c0_i32_1 = arith.constant 0 : i32
    return %arg0, %c0_i32, %c0_i32_0 : i32, i32, i32
  }
  func.func @transform_1(%arg0: i32) -> (i32, i32, i32) {
    %c0_i32 = arith.constant 0 : i32
    %c0_i32_0 = arith.constant 0 : i32
    %c0_i32_1 = arith.constant 0 : i32
    return %arg0, %c0_i32, %c0_i32_0 : i32, i32, i32
  }
  func.func @transform_2(%arg0: i32) -> (i32, i32, i32) {
    %c0_i32 = arith.constant 0 : i32
    %c0_i32_0 = arith.constant 0 : i32
    %c0_i32_1 = arith.constant 0 : i32
    return %arg0, %c0_i32, %c0_i32_0 : i32, i32, i32
  }
  func.func @transform_3(%arg0: i32) -> (i32, i32) {
    %c0_i32 = arith.constant 0 : i32
    %c0_i32_0 = arith.constant 0 : i32
    %c0_i32_1 = arith.constant 0 : i32
    return %c0_i32, %c0_i32_0 : i32, i32
  }
  func.func @transform_4(%arg0: i32) -> (i32, i32, i32) {
    %c0_i32 = arith.constant 0 : i32
    %c0_i32_0 = arith.constant 0 : i32
    %c0_i32_1 = arith.constant 0 : i32
    return %arg0, %c0_i32, %c0_i32_0 : i32, i32, i32
  }
}

</mosaic_0001>

<llo_original>
// kernel: tpu_custom_call.1
$region0: #{tpu_custom_call.1}
  #allocation0 [shape = 'u32[]', space=smem, size = 0x4, offset = 0x4, fixed_abs, tag = 'smem constant byte address 0x4 - core index']
  #allocation1 [shape = 'u32[144,128]{1,0:T(1,128)}', space=vmem, size = 0x12000, scoped, tag = 'internal scratch']
  %s0 = inlined_call_operand.hbm [shape: f32[4,56,56], index: 0, kind: input, shape index: {}]
  %s1 = inlined_call_operand.hbm [shape: f32[4,56,56], index: 1, kind: input, shape index: {}]
  %s2 = inlined_call_operand.hbm [shape: f32[4,56,56], index: 2, kind: input, shape index: {}]
  %s3 = inlined_call_operand.hbm [shape: f32[56,56], index: 3, kind: input, shape index: {}]
  %s4 = inlined_call_operand.hbm [shape: f32[4,56,56], index: 4, kind: output, shape index: {}]
  %s5 = sld [smem:[#allocation0]]
  $region65: #{tpu_custom_call.1} parent=0
    _
  %s7 = ssub.s32 1, %s5
  %s8 = scalar_select 0, %s7, %s5
  $region1: #{tpu_custom_call.1} parent=0
    #allocation2 [shape = 'u8[57344]{0}', space=vmem, size = 0xe000, scoped, tag = 'input window, operand 0']
    #allocation3 [shape = 's32[2]{0}', space=sflag, size = 0x8, scoped, tag = 'scoped memory for tpu_custom_call.1']
    #allocation4 [shape = 's32[2]{0}', space=sflag, size = 0x8, scoped, tag = 'scoped memory for tpu_custom_call.1']
    #allocation5 [shape = 'u8[57344]{0}', space=vmem, size = 0xe000, scoped, tag = 'input window, operand 1']
    #allocation6 [shape = 's32[2]{0}', space=sflag, size = 0x8, scoped, tag = 'scoped memory for tpu_custom_call.1']
    #allocation7 [shape = 'u8[57344]{0}', space=vmem, size = 0xe000, scoped, tag = 'input window, operand 2']
    #allocation8 [shape = 'u8[28672]{0}', space=vmem, size = 0x7000, scoped, tag = 'input window, operand 3, single buffered']
    #allocation9 [shape = 's32[1]{0}', space=sflag, size = 0x4, scoped, tag = 'scoped memory for tpu_custom_call.1']
    #allocation10 [shape = 'u8[57344]{0}', space=vmem, size = 0xe000, scoped, tag = 'output window, operand 0']
    %9 = vsyncpa [#allocation3], 0
    %s10 = scalar_lea.sflag [#allocation3], 1
    %11 = vsyncpa %s10, 0
    %12 = vsyncpa [#allocation6], 0
    %s13 = scalar_lea.sflag [#allocation6], 1
    %14 = vsyncpa %s13, 0
    %15 = vsyncpa [#allocation9], 0
    %16 = vsyncpa [#allocation4], 0
    %s17 = scalar_lea.sflag [#allocation4], 1
    %18 = vsyncpa %s17, 0
    loop: start=0, step=1, limit=6
    $region2: #{tpu_custom_call.1} parent=1 // loop_pre_header
      _
    $region3: #{tpu_custom_call.1} parent=1 // loop_header
      %s20 = sphi 0, %s24
      %p21 = scmp.ge.s32.totalorder %s20, 6
      %s30 = sphi 0, %s32
      %s33 = sphi 0, %s30
      %s34 = sphi 0, %s33
      %s50 = sphi 0, %s34
      %s56 = sphi 0, %s58
      %s59 = sphi 0, %s56
      %s60 = sphi 0, %s59
      %s76 = sphi 0, %s60
      %s82 = sphi 0, %s84
      %s85 = sphi 0, %s82
      %s86 = sphi 0, %s85
      %s102 = sphi 0, %s86
      %s106 = sphi 0, %s106
      %s108 = sphi 0, %s106
      %s109 = sphi 0, %s108
      %s123 = sphi 0, %s109
      %s129 = sphi 0, %s131
      %s132 = sphi 0, %s129
      %s133 = sphi 0, %s132
      %s149 = sphi 0, %s133
    $region4: #{tpu_custom_call.1} parent=1 // loop_header_branch
      %23 = sbr.rel (%p21) target = $region8
    $region5: #{tpu_custom_call.1} parent=1 // loop_body
      %s25 = ssub.s32 %s20, 1
      %s26 = ssub.s32 %s20, 2
      %s27 = sadd.s32 %s20, 1
      %s28 = ssub.s32 %s20, %s27
      %p29 = scmp.eq.s32.totalorder %s28, 0
      %s31 = sadd.s32 %s30, 1
      %s32 = scalar_select %p29, %s30, %s31
      %p35 = pneg %p29
      %p36 = scmp.eq.s32.totalorder %s20, 3
      %p37 = por %p35, %p36
      %p38 = scmp.ne.s32.totalorder %s30, %s33
      %p39 = scmp.eq.s32.totalorder %s20, 0
      %p40 = por %p38, %p39
      %p41 = scmp.ne.s32.totalorder %s30, %s33
      %p42 = scmp.eq.s32.totalorder %s25, 3
      %p43 = por %p41, %p42
      %p44 = scmp.ne.s32.totalorder %s33, %s34
      %p45 = scmp.eq.s32.totalorder %s25, 0
      %p46 = por %p44, %p45
      %p47 = scmp.ne.s32.totalorder %s33, %s34
      %p48 = scmp.eq.s32.totalorder %s26, 3
      %p49 = por %p47, %p48
      %p51 = scmp.ne.s32.totalorder %s34, %s50
      %p52 = scmp.eq.s32.totalorder %s26, 0
      %p53 = por %p51, %p52
      %s54 = ssub.s32 %s20, %s27
      %p55 = scmp.eq.s32.totalorder %s54, 0
      %s57 = sadd.s32 %s56, 1
      %s58 = scalar_select %p55, %s56, %s57
      %p61 = pneg %p55
      %p62 = scmp.eq.s32.totalorder %s20, 3
      %p63 = por %p61, %p62
      %p64 = scmp.ne.s32.totalorder %s56, %s59
      %p65 = scmp.eq.s32.totalorder %s20, 0
      %p66 = por %p64, %p65
      %p67 = scmp.ne.s32.totalorder %s56, %s59
      %p68 = scmp.eq.s32.totalorder %s25, 3
      %p69 = por %p67, %p68
      %p70 = scmp.ne.s32.totalorder %s59, %s60
      %p71 = scmp.eq.s32.totalorder %s25, 0
      %p72 = por %p70, %p71
      %p73 = scmp.ne.s32.totalorder %s59, %s60
      %p74 = scmp.eq.s32.totalorder %s26, 3
      %p75 = por %p73, %p74
      %p77 = scmp.ne.s32.totalorder %s60, %s76
      %p78 = scmp.eq.s32.totalorder %s26, 0
      %p79 = por %p77, %p78
      %s80 = ssub.s32 %s20, %s27
      %p81 = scmp.eq.s32.totalorder %s80, 0
      %s83 = sadd.s32 %s82, 1
      %s84 = scalar_select %p81, %s82, %s83
      %p87 = pneg %p81
      %p88 = scmp.eq.s32.totalorder %s20, 3
      %p89 = por %p87, %p88
      %p90 = scmp.ne.s32.totalorder %s82, %s85
      %p91 = scmp.eq.s32.totalorder %s20, 0
      %p92 = por %p90, %p91
      %p93 = scmp.ne.s32.totalorder %s82, %s85
      %p94 = scmp.eq.s32.totalorder %s25, 3
      %p95 = por %p93, %p94
      %p96 = scmp.ne.s32.totalorder %s85, %s86
      %p97 = scmp.eq.s32.totalorder %s25, 0
      %p98 = por %p96, %p97
      %p99 = scmp.ne.s32.totalorder %s85, %s86
      %p100 = scmp.eq.s32.totalorder %s26, 3
      %p101 = por %p99, %p100
      %p103 = scmp.ne.s32.totalorder %s86, %s102
      %p104 = scmp.eq.s32.totalorder %s26, 0
      %p105 = por %p103, %p104
      %s107 = sadd.s32 %s106, 1
      %p110 = scmp.eq.s32.totalorder %s20, 3
      %p111 = scmp.ne.s32.totalorder %s106, %s108
      %p112 = scmp.eq.s32.totalorder %s20, 0
      %p113 = por %p111, %p112
      %p114 = scmp.ne.s32.totalorder %s106, %s108
      %p115 = scmp.eq.s32.totalorder %s25, 3
      %p116 = por %p114, %p115
      %p117 = scmp.ne.s32.totalorder %s108, %s109
      %p118 = scmp.eq.s32.totalorder %s25, 0
      %p119 = por %p117, %p118
      %p120 = scmp.ne.s32.totalorder %s108, %s109
      %p121 = scmp.eq.s32.totalorder %s26, 3
      %p122 = por %p120, %p121
      %p124 = scmp.ne.s32.totalorder %s109, %s123
      %p125 = scmp.eq.s32.totalorder %s26, 0
      %p126 = por %p124, %p125
      %s127 = ssub.s32 %s20, %s27
      %p128 = scmp.eq.s32.totalorder %s127, 0
      %s130 = sadd.s32 %s129, 1
      %s131 = scalar_select %p128, %s129, %s130
      %p134 = pneg %p128
      %p135 = scmp.eq.s32.totalorder %s20, 3
      %p136 = por %p134, %p135
      %p137 = scmp.ne.s32.totalorder %s129, %s132
      %p138 = scmp.eq.s32.totalorder %s20, 0
      %p139 = por %p137, %p138
      %p140 = scmp.ne.s32.totalorder %s129, %s132
      %p141 = scmp.eq.s32.totalorder %s25, 3
      %p142 = por %p140, %p141
      %p143 = scmp.ne.s32.totalorder %s132, %s133
      %p144 = scmp.eq.s32.totalorder %s25, 0
      %p145 = por %p143, %p144
      %p146 = scmp.ne.s32.totalorder %s132, %s133
      %p147 = scmp.eq.s32.totalorder %s26, 3
      %p148 = por %p146, %p147
      %p150 = scmp.ne.s32.totalorder %s133, %s149
      %p151 = scmp.eq.s32.totalorder %s26, 0
      %p152 = por %p150, %p151
      %p153 = scmp.le.s32.totalorder 1, %s20
      %p154 = scmp.lt.s32.totalorder %s20, 5
      %p155 = pnand %p153, %p154
      %p156 = pneg %p155
      // Predicated region
      $region9: #{tpu_custom_call.1} parent=5 // pred_check
        _
      $region10: #{tpu_custom_call.1} parent=5 // pred_check_branch
        %158 = sbr.rel (%p155) target = $region12
      $region11: #{tpu_custom_call.1} parent=5 // pred_region
        %s159 = ssub.s32 %s20, 1
        // Predicated region
        $region13: #{tpu_custom_call.1} parent=11 // pred_check
          %p160 = pneg %p119
        $region14: #{tpu_custom_call.1} parent=11 // pred_check_branch
          %162 = sbr.rel (%p160) target = $region16
        $region15: #{tpu_custom_call.1} parent=11 // pred_region
          %s164 = ssub.s32 896, 896
          %165 = vsyncadd [#allocation9], %s164
          %s166 = sshll.u32 [#allocation8], 4
          %s167 = int_to_ptr.vmem [resolvable:$true] %s166
          %172 = dma.hbm_to_vmem [thread:$0]  %s3, 896, %s167, [#allocation9], 128, 128, 8
        $region16: #{tpu_custom_call.1} parent=11 // pred_fallthru
          _
      $region12: #{tpu_custom_call.1} parent=5 // pred_fallthru
        _
      %p173 = scmp.lt.s32.totalorder %s20, 4
      // Predicated region
      $region17: #{tpu_custom_call.1} parent=5 // pred_check
        %p174 = pneg %p173
      $region18: #{tpu_custom_call.1} parent=5 // pred_check_branch
        %176 = sbr.rel (%p174) target = $region20
      $region19: #{tpu_custom_call.1} parent=5 // pred_region
        // Predicated region
        $region21: #{tpu_custom_call.1} parent=19 // pred_check
          %p177 = pneg %p40
        $region22: #{tpu_custom_call.1} parent=19 // pred_check_branch
          %179 = sbr.rel (%p177) target = $region24
        $region23: #{tpu_custom_call.1} parent=19 // pred_region
          %s180 = sand.u32 %s30, 1
          %s181 = scalar_lea.sflag [#allocation3], %s180
          %s182 = sand.u32 %s30, 1
          %s183 = smul.addr %s182, 56
          %s184 = scalar_lea.vmem [#allocation2], %s183
          %s186 = ssub.s32 896, 896
          %187 = vsyncadd %s181, %s186
          %s188 = smul.addr %s20, 7
          %s189 = smul.addr %s188, 128
          %s190 = scalar_lea.hbm %s0, %s189
          %s191 = sshll.u32 %s184, 4
          %s192 = int_to_ptr.vmem [resolvable:$true] %s191
          %197 = dma.hbm_to_vmem [thread:$0]  %s190, 896, %s192, %s181, 128, 128, 8
        $region24: #{tpu_custom_call.1} parent=19 // pred_fallthru
          _
        // Predicated region
        $region25: #{tpu_custom_call.1} parent=19 // pred_check
          %p198 = pneg %p66
        $region26: #{tpu_custom_call.1} parent=19 // pred_check_branch
          %200 = sbr.rel (%p198) target = $region28
        $region27: #{tpu_custom_call.1} parent=19 // pred_region
          %s201 = sand.u32 %s20, 1
          %s202 = scalar_lea.sflag [#allocation6], %s201
          %s203 = sand.u32 %s56, 1
          %s204 = smul.addr %s203, 56
          %s205 = scalar_lea.vmem [#allocation5], %s204
          %s207 = ssub.s32 896, 896
          %208 = vsyncadd %s202, %s207
          %s209 = smul.addr %s20, 7
          %s210 = smul.addr %s209, 128
          %s211 = scalar_lea.hbm %s1, %s210
          %s212 = sshll.u32 %s205, 4
          %s213 = int_to_ptr.vmem [resolvable:$true] %s212
          %218 = dma.hbm_to_vmem [thread:$0]  %s211, 896, %s213, %s202, 128, 128, 8
        $region28: #{tpu_custom_call.1} parent=19 // pred_fallthru
          _
        // Predicated region
        $region29: #{tpu_custom_call.1} parent=19 // pred_check
          %p219 = pneg %p92
        $region30: #{tpu_custom_call.1} parent=19 // pred_check_branch
          %221 = sbr.rel (%p219) target = $region32
        $region31: #{tpu_custom_call.1} parent=19 // pred_region
          %s222 = sand.u32 %s20, 1
          %s223 = scalar_lea.sflag [#allocation6], %s222
          %s224 = sand.u32 %s82, 1
          %s225 = smul.addr %s224, 56
          %s226 = scalar_lea.vmem [#allocation7], %s225
          %s228 = ssub.s32 896, 896
          %229 = vsyncadd %s223, %s228
          %s230 = smul.addr %s20, 7
          %s231 = smul.addr %s230, 128
          %s232 = scalar_lea.hbm %s2, %s231
          %s233 = sshll.u32 %s226, 4
          %s234 = int_to_ptr.vmem [resolvable:$true] %s233
          %239 = dma.hbm_to_vmem [thread:$0]  %s232, 896, %s234, %s223, 128, 128, 8
        $region32: #{tpu_custom_call.1} parent=19 // pred_fallthru
          _
      $region20: #{tpu_custom_call.1} parent=5 // pred_fallthru
        _
      %p240 = scmp.le.s32.totalorder 1, %s20
      %p241 = scmp.lt.s32.totalorder %s20, 5
      %p242 = pnand %p240, %p241
      %p243 = pneg %p242
      // Predicated region
      $region33: #{tpu_custom_call.1} parent=5 // pred_check
        _
      $region34: #{tpu_custom_call.1} parent=5 // pred_check_branch
        %245 = sbr.rel (%p242) target = $region36
      $region35: #{tpu_custom_call.1} parent=5 // pred_region
        %s246 = ssub.s32 %s20, 1
        %s247 = sand.u32 %s33, 1
        %s248 = scalar_lea.sflag [#allocation3], %s247
        %s249 = sand.u32 %s33, 1
        %s250 = smul.addr %s249, 56
        %s251 = scalar_lea.vmem [#allocation2], %s250
        // Predicated region
        $region37: #{tpu_custom_call.1} parent=35 // pred_check
          %p252 = pneg %p46
        $region38: #{tpu_custom_call.1} parent=35 // pred_check_branch
          %254 = sbr.rel (%p252) target = $region40
        $region39: #{tpu_custom_call.1} parent=35 // pred_region
          %255 = dma.done %s248, 896
        $region40: #{tpu_custom_call.1} parent=35 // pred_fallthru
          _
        %s256 = sand.u32 %s25, 1
        %s257 = scalar_lea.sflag [#allocation6], %s256
        %s258 = sand.u32 %s59, 1
        %s259 = smul.addr %s258, 56
        %s260 = scalar_lea.vmem [#allocation5], %s259
        // Predicated region
        $region41: #{tpu_custom_call.1} parent=35 // pred_check
          %p261 = pneg %p72
        $region42: #{tpu_custom_call.1} parent=35 // pred_check_branch
          %263 = sbr.rel (%p261) target = $region44
        $region43: #{tpu_custom_call.1} parent=35 // pred_region
          %264 = dma.done %s257, 896
        $region44: #{tpu_custom_call.1} parent=35 // pred_fallthru
          _
        %s265 = sand.u32 %s25, 1
        %s266 = scalar_lea.sflag [#allocation6], %s265
        %s267 = sand.u32 %s85, 1
        %s268 = smul.addr %s267, 56
        %s269 = scalar_lea.vmem [#allocation7], %s268
        // Predicated region
        $region45: #{tpu_custom_call.1} parent=35 // pred_check
          %p270 = pneg %p98
        $region46: #{tpu_custom_call.1} parent=35 // pred_check_branch
          %272 = sbr.rel (%p270) target = $region48
        $region47: #{tpu_custom_call.1} parent=35 // pred_region
          %273 = dma.done %s266, 896
        $region48: #{tpu_custom_call.1} parent=35 // pred_fallthru
          _
        // Predicated region
        $region49: #{tpu_custom_call.1} parent=35 // pred_check
          %p274 = pneg %p119
        $region50: #{tpu_custom_call.1} parent=35 // pred_check_branch
          %276 = sbr.rel (%p274) target = $region52
        $region51: #{tpu_custom_call.1} parent=35 // pred_region
          %277 = dma.done [#allocation9], 896
        $region52: #{tpu_custom_call.1} parent=35 // pred_fallthru
          _
        %s278 = sand.u32 %s33, 1
        %s279 = scalar_lea.sflag [#allocation3], %s278
        %s280 = sand.u32 %s33, 1
        %s281 = smul.addr %s280, 56
        %s282 = scalar_lea.vmem [#allocation2], %s281
        %p283 = pneg %p46
        %p284 = pneg %p43
        %s285 = sand.u32 %s25, 1
        %s286 = scalar_lea.sflag [#allocation6], %s285
        %s287 = sand.u32 %s59, 1
        %s288 = smul.addr %s287, 56
        %s289 = scalar_lea.vmem [#allocation5], %s288
        %p290 = pneg %p72
        %p291 = pneg %p69
        %s292 = sand.u32 %s25, 1
        %s293 = scalar_lea.sflag [#allocation6], %s292
        %s294 = sand.u32 %s85, 1
        %s295 = smul.addr %s294, 56
        %s296 = scalar_lea.vmem [#allocation7], %s295
        %p297 = pneg %p98
        %p298 = pneg %p95
        %p299 = pneg %p119
        %p300 = pneg %p116
        %p301 = pneg %p145
        %p302 = pneg %p142
        %s303 = sand.u32 %s132, 1
        %s304 = scalar_lea.sflag [#allocation4], %s303
        %s305 = sand.u32 %s132, 1
        %s306 = smul.addr %s305, 56
        %s307 = scalar_lea.vmem [#allocation10], %s306
        %v309 = vld [vmem:[%s251] sm:$0xff]
        %v310 = vld [vmem:[%s251 + $0x8] sm:$0xff]
        %v311 = vld [vmem:[%s251 + $0x10] sm:$0xff]
        %v312 = vld [vmem:[%s251 + $0x18] sm:$0xff]
        %v313 = vld [vmem:[%s251 + $0x20] sm:$0xff]
        %v314 = vld [vmem:[%s251 + $0x28] sm:$0xff]
        %v315 = vld [vmem:[%s251 + $0x30] sm:$0xff]
        %v316 = vmul.f32 %v309, 0.13363062
        %v317 = vmul.f32 %v310, 0.13363062
        %v318 = vmul.f32 %v311, 0.13363062
        %v319 = vmul.f32 %v312, 0.13363062
        %v320 = vmul.f32 %v313, 0.13363062
        %v321 = vmul.f32 %v314, 0.13363062
        %v322 = vmul.f32 %v315, 0.13363062
        %v323 = vpack.c.bf16 %v317, %v316
        %v324 = vpack.c.bf16 %v319, %v318
        %v325 = vpack.c.bf16 %v321, %v320
        %v326 = vpack.c.bf16 %v322, %v322
        %v327 = vld [vmem:[%s260] sm:$0xff]
        %v328 = vld [vmem:[%s260 + $0x8] sm:$0xff]
        %v329 = vld [vmem:[%s260 + $0x10] sm:$0xff]
        %v330 = vld [vmem:[%s260 + $0x18] sm:$0xff]
        %v331 = vld [vmem:[%s260 + $0x20] sm:$0xff]
        %v332 = vld [vmem:[%s260 + $0x28] sm:$0xff]
        %v333 = vld [vmem:[%s260 + $0x30] sm:$0xff]
        %v334 = vpack.c.bf16 %v328, %v327
        %v335 = vpack.c.bf16 %v330, %v329
        %v336 = vpack.c.bf16 %v332, %v331
        %v337 = vpack.c.bf16 %v333, %v333
        %v338 = vld [vmem:[#allocation8] sm:$0xff]
        %v339 = vld [vmem:[#allocation8 + $0x8] sm:$0xff]
        %v340 = vld [vmem:[#allocation8 + $0x10] sm:$0xff]
        %v341 = vld [vmem:[#allocation8 + $0x18] sm:$0xff]
        %v342 = vld [vmem:[#allocation8 + $0x20] sm:$0xff]
        %v343 = vld [vmem:[#allocation8 + $0x28] sm:$0xff]
        %v344 = vld [vmem:[#allocation8 + $0x30] sm:$0xff]
        %vm345 = vcmask 457728
        %v347 = vsel %vm345, %v323, 0
        %v350 = vsel %vm345, %v324, 0
        %v353 = vsel %vm345, %v325, 0
        %v356 = vsel %vm345, %v326, 0
        %v359 = vsel %vm345, %v334, 0
        %v362 = vsel %vm345, %v335, 0
        %v365 = vsel %vm345, %v336, 0
        %v368 = vsel %vm345, %v337, 0
        %370 = vmatprep.subr.bf16.mxu0 0
        %371 = vmatpush1.bf16.xpose.msra.mxu0 %v359
        %372 = vmatprep.subr.bf16.mxu0 0
        %373 = vmatpush1.bf16.xpose.msra.mxu0 %v362
        %374 = vmatprep.subr.bf16.mxu0 0
        %375 = vmatpush1.bf16.xpose.msra.mxu0 %v365
        %376 = vmatprep.subr.bf16.mxu0 0
        %377 = vmatpush1.bf16.xpose.msra.mxu0 %v368
        %378 = vmatprep.subr.bf16.mxu0 0
        %379 = vmatpush1.bf16.xpose.msra.mxu0 0
        %380 = vmatprep.subr.bf16.mxu0 0
        %381 = vmatpush1.bf16.xpose.msra.mxu0 0
        %382 = vmatprep.subr.bf16.mxu0 0
        %383 = vmatpush1.bf16.xpose.msra.mxu0 0
        %384 = vmatprep.subr.bf16.mxu0 0
        %385 = vmatpush1.bf16.xpose.msra.mxu0 0
        %386 = vmatprep.subr.bf16.mxu0 0
        %387 = vmatpush1.bf16.xpose.msra.mxu0 0
        %388 = vmatprep.subr.bf16.mxu0 0
        %389 = vmatpush1.bf16.xpose.msra.mxu0 0
        %390 = vmatprep.subr.bf16.mxu0 0
        %391 = vmatpush1.bf16.xpose.msra.mxu0 0
        %392 = vmatprep.subr.bf16.mxu0 0
        %393 = vmatpush1.bf16.xpose.msra.mxu0 0
        %394 = vmatprep.subr.bf16.mxu0 0
        %395 = vmatpush1.bf16.xpose.msra.mxu0 0
        %396 = vmatprep.subr.bf16.mxu0 0
        %397 = vmatpush1.bf16.xpose.msra.mxu0 0
        %398 = vmatprep.subr.bf16.mxu0 0
        %399 = vmatpush1.bf16.xpose.msra.mxu0 0
        %400 = vmatprep.subr.bf16.mxu0 0
        %401 = vmatpush1.bf16.xpose.msra.mxu0 0
        %402 = vmatprep.mubr.bf16.mxu0 0
        %403 = vmatmul.mubr.bf16.gmra.mrb[0].mxu0 %v347
        %v404 = vpop.f32.mrb[0].mxu0
        %v405 = vadd.f32 %v338, %v404
        %v406 = vpop.f32.mrb[0].mxu0
        %v407 = vpop.f32.mrb[0].mxu0
        %v408 = vadd.f32 %v339, %v407
        %v409 = vpop.f32.mrb[0].mxu0
        %410 = vmatprep.mubr.bf16.mxu0 0
        %411 = vmatmul.mubr.bf16.gmra.mrb[0].mxu0 %v350
        %v412 = vpop.f32.mrb[0].mxu0
        %v413 = vadd.f32 %v340, %v412
        %v414 = vpop.f32.mrb[0].mxu0
        %v415 = vpop.f32.mrb[0].mxu0
        %v416 = vadd.f32 %v341, %v415
        %v417 = vpop.f32.mrb[0].mxu0
        %418 = vmatprep.mubr.bf16.mxu0 0
        %419 = vmatmul.mubr.bf16.gmra.mrb[0].mxu0 %v353
        %v420 = vpop.f32.mrb[0].mxu0
        %v421 = vadd.f32 %v342, %v420
        %v422 = vpop.f32.mrb[0].mxu0
        %v423 = vpop.f32.mrb[0].mxu0
        %v424 = vadd.f32 %v343, %v423
        %v425 = vpop.f32.mrb[0].mxu0
        %426 = vmatprep.mubr.bf16.mxu0 0
        %427 = vmatmul.mubr.bf16.gmra.mrb[0].mxu0 %v356
        %v428 = vpop.f32.mrb[0].mxu0
        %v429 = vadd.f32 %v344, %v428
        %v430 = vpop.f32.mrb[0].mxu0
        %v431 = vpop.f32.mrb[0].mxu0
        %v432 = vpop.f32.mrb[0].mxu0
        %433 = vdwg.mxu0
        %v434 = vsel %vm345, %v405, -inf
        %435 = vmax.xlane.f32.xlu0 %v434
        %v436 = vpop.xlane.xlu0 %435
        %v437 = vsel %vm345, %v408, -inf
        %438 = vmax.xlane.f32.xlu0 %v437
        %v439 = vpop.xlane.xlu0 %438
        %v440 = vsel %vm345, %v413, -inf
        %441 = vmax.xlane.f32.xlu0 %v440
        %v442 = vpop.xlane.xlu0 %441
        %v443 = vsel %vm345, %v416, -inf
        %444 = vmax.xlane.f32.xlu0 %v443
        %v445 = vpop.xlane.xlu0 %444
        %v446 = vsel %vm345, %v421, -inf
        %447 = vmax.xlane.f32.xlu0 %v446
        %v448 = vpop.xlane.xlu0 %447
        %v449 = vsel %vm345, %v424, -inf
        %450 = vmax.xlane.f32.xlu0 %v449
        %v451 = vpop.xlane.xlu0 %450
        %v452 = vsel %vm345, %v429, -inf
        %453 = vmax.xlane.f32.xlu0 %v452
        %v454 = vpop.xlane.xlu0 %453
        %v455 = vsub.f32 %v405, %v436
        %v456 = vsub.f32 %v408, %v439
        %v457 = vsub.f32 %v413, %v442
        %v458 = vsub.f32 %v416, %v445
        %v459 = vsub.f32 %v421, %v448
        %v460 = vsub.f32 %v424, %v451
        %v461 = vsub.f32 %v429, %v454
        %v462 = vmul.f32 %v455, 1.442695
        %v463 = vpow.pop %v462
        %v464 = vmul.f32 %v456, 1.442695
        %v465 = vpow.pop %v464
        %v466 = vmul.f32 %v457, 1.442695
        %v467 = vpow.pop %v466
        %v468 = vmul.f32 %v458, 1.442695
        %v469 = vpow.pop %v468
        %v470 = vmul.f32 %v459, 1.442695
        %v471 = vpow.pop %v470
        %v472 = vmul.f32 %v460, 1.442695
        %v473 = vpow.pop %v472
        %v474 = vmul.f32 %v461, 1.442695
        %v475 = vpow.pop %v474
        %v476 = vsel %vm345, %v463, 0.0
        %477 = vadd.xlane.f32.xlu0 %v476
        %v478 = vpop.xlane.xlu0 %477
        %v479 = vsel %vm345, %v465, 0.0
        %480 = vadd.xlane.f32.xlu0 %v479
        %v481 = vpop.xlane.xlu0 %480
        %v482 = vsel %vm345, %v467, 0.0
        %483 = vadd.xlane.f32.xlu0 %v482
        %v484 = vpop.xlane.xlu0 %483
        %v485 = vsel %vm345, %v469, 0.0
        %486 = vadd.xlane.f32.xlu0 %v485
        %v487 = vpop.xlane.xlu0 %486
        %v488 = vsel %vm345, %v471, 0.0
        %489 = vadd.xlane.f32.xlu0 %v488
        %v490 = vpop.xlane.xlu0 %489
        %v491 = vsel %vm345, %v473, 0.0
        %492 = vadd.xlane.f32.xlu0 %v491
        %v493 = vpop.xlane.xlu0 %492
        %v494 = vsel %vm345, %v475, 0.0
        %495 = vadd.xlane.f32.xlu0 %v494
        %v496 = vpop.xlane.xlu0 %495
        %v497 = vrcp.pop %v478
        %v498 = vrcp.pop %v481
        %v499 = vrcp.pop %v484
        %v500 = vrcp.pop %v487
        %v501 = vrcp.pop %v490
        %v502 = vrcp.pop %v493
        %v503 = vrcp.pop %v496
        %v504 = vmul.f32 %v463, %v497
        %v505 = vmul.f32 %v465, %v498
        %v506 = vmul.f32 %v467, %v499
        %v507 = vmul.f32 %v469, %v500
        %v508 = vmul.f32 %v471, %v501
        %v509 = vmul.f32 %v473, %v502
        %v510 = vmul.f32 %v475, %v503
        %v511 = vpack.c.bf16 %v505, %v504
        %v512 = vpack.c.bf16 %v507, %v506
        %v513 = vpack.c.bf16 %v509, %v508
        %v514 = vpack.c.bf16 %v510, %v510
        %v515 = vld [vmem:[%s269] sm:$0xff]
        %v516 = vld [vmem:[%s269 + $0x8] sm:$0xff]
        %v517 = vld [vmem:[%s269 + $0x10] sm:$0xff]
        %v518 = vld [vmem:[%s269 + $0x18] sm:$0xff]
        %v519 = vld [vmem:[%s269 + $0x20] sm:$0xff]
        %v520 = vld [vmem:[%s269 + $0x28] sm:$0xff]
        %v521 = vld [vmem:[%s269 + $0x30] sm:$0xff]
        %v522 = vpack.c.bf16 %v516, %v515
        %v523 = vpack.c.bf16 %v518, %v517
        %v524 = vpack.c.bf16 %v520, %v519
        %v525 = vpack.c.bf16 %v521, %v521
        %v527 = vsel %vm345, %v511, 0
        %v530 = vsel %vm345, %v512, 0
        %v533 = vsel %vm345, %v513, 0
        %v536 = vsel %vm345, %v514, 0
        %vm538 = vcmask 1043456
        %v540 = vsel %vm538, %v525, 0
        %542 = vmatprep.subr.bf16.mxu0 0
        %543 = vmatpush1.bf16.msra.mxu0 %v522
        %544 = vmatprep.subr.bf16.mxu0 0
        %545 = vmatpush1.bf16.msra.mxu0 %v523
        %546 = vmatprep.subr.bf16.mxu0 0
        %547 = vmatpush1.bf16.msra.mxu0 %v524
        %548 = vmatprep.subr.bf16.mxu0 0
        %549 = vmatpush1.bf16.msra.mxu0 %v540
        %550 = vmatprep.subr.bf16.mxu0 0
        %551 = vmatpush1.bf16.msra.mxu0 0
        %552 = vmatprep.subr.bf16.mxu0 0
        %553 = vmatpush1.bf16.msra.mxu0 0
        %554 = vmatprep.subr.bf16.mxu0 0
        %555 = vmatpush1.bf16.msra.mxu0 0
        %556 = vmatprep.subr.bf16.mxu0 0
        %557 = vmatpush1.bf16.msra.mxu0 0
        %558 = vmatprep.subr.bf16.mxu0 0
        %559 = vmatpush1.bf16.msra.mxu0 0
        %560 = vmatprep.subr.bf16.mxu0 0
        %561 = vmatpush1.bf16.msra.mxu0 0
        %562 = vmatprep.subr.bf16.mxu0 0
        %563 = vmatpush1.bf16.msra.mxu0 0
        %564 = vmatprep.subr.bf16.mxu0 0
        %565 = vmatpush1.bf16.msra.mxu0 0
        %566 = vmatprep.subr.bf16.mxu0 0
        %567 = vmatpush1.bf16.msra.mxu0 0
        %568 = vmatprep.subr.bf16.mxu0 0
        %569 = vmatpush1.bf16.msra.mxu0 0
        %570 = vmatprep.subr.bf16.mxu0 0
        %571 = vmatpush1.bf16.msra.mxu0 0
        %572 = vmatprep.subr.bf16.mxu0 0
        %573 = vmatpush1.bf16.msra.mxu0 0
        %574 = vmatprep.mubr.bf16.mxu0 0
        %575 = vmatmul.mubr.bf16.gmra.mrb[0].mxu0 %v527
        %v576 = vpop.f32.mrb[0].mxu0
        %v577 = vadd.f32 0.0, %v576
        %v578 = vpop.f32.mrb[0].mxu0
        %v579 = vpop.f32.mrb[0].mxu0
        %v580 = vadd.f32 0.0, %v579
        %v581 = vpop.f32.mrb[0].mxu0
        %582 = vmatprep.mubr.bf16.mxu0 0
        %583 = vmatmul.mubr.bf16.gmra.mrb[0].mxu0 %v530
        %v584 = vpop.f32.mrb[0].mxu0
        %v585 = vadd.f32 0.0, %v584
        %v586 = vpop.f32.mrb[0].mxu0
        %v587 = vpop.f32.mrb[0].mxu0
        %v588 = vadd.f32 0.0, %v587
        %v589 = vpop.f32.mrb[0].mxu0
        %590 = vmatprep.mubr.bf16.mxu0 0
        %591 = vmatmul.mubr.bf16.gmra.mrb[0].mxu0 %v533
        %v592 = vpop.f32.mrb[0].mxu0
        %v593 = vadd.f32 0.0, %v592
        %v594 = vpop.f32.mrb[0].mxu0
        %v595 = vpop.f32.mrb[0].mxu0
        %v596 = vadd.f32 0.0, %v595
        %v597 = vpop.f32.mrb[0].mxu0
        %598 = vmatprep.mubr.bf16.mxu0 0
        %599 = vmatmul.mubr.bf16.gmra.mrb[0].mxu0 %v536
        %v600 = vpop.f32.mrb[0].mxu0
        %v601 = vadd.f32 0.0, %v600
        %v602 = vpop.f32.mrb[0].mxu0
        %v603 = vpop.f32.mrb[0].mxu0
        %v604 = vpop.f32.mrb[0].mxu0
        %605 = vdwg.mxu0
        %606 = vst.msk [vmem:[%s307] sm:$0xff] %vm345, %v577
        %607 = vst.msk [vmem:[%s307 + $0x8] sm:$0xff] %vm345, %v580
        %608 = vst.msk [vmem:[%s307 + $0x10] sm:$0xff] %vm345, %v585
        %609 = vst.msk [vmem:[%s307 + $0x18] sm:$0xff] %vm345, %v588
        %610 = vst.msk [vmem:[%s307 + $0x20] sm:$0xff] %vm345, %v593
        %611 = vst.msk [vmem:[%s307 + $0x28] sm:$0xff] %vm345, %v596
        %612 = vst.msk [vmem:[%s307 + $0x30] sm:$0xff] %vm345, %v601
        %s613 = sand.u32 %s132, 1
        %s614 = scalar_lea.sflag [#allocation4], %s613
        %s615 = sand.u32 %s132, 1
        %s616 = smul.addr %s615, 56
        %s617 = scalar_lea.vmem [#allocation10], %s616
        // Predicated region
        $region53: #{tpu_custom_call.1} parent=35 // pred_check
          %p618 = pneg %p142
        $region54: #{tpu_custom_call.1} parent=35 // pred_check_branch
          %620 = sbr.rel (%p618) target = $region56
        $region55: #{tpu_custom_call.1} parent=35 // pred_region
          %s622 = ssub.s32 896, 896
          %623 = vsyncadd %s614, %s622
          %s624 = smul.addr %s25, 7
          %s625 = smul.addr %s624, 128
          %s626 = scalar_lea.hbm %s4, %s625
          %s627 = sshll.u32 %s617, 4
          %s628 = int_to_ptr.vmem [resolvable:$true] %s627
          %633 = dma.vmem_to_hbm [thread:$0]  %s628, 896, %s626, %s614, 128, 128, 8
        $region56: #{tpu_custom_call.1} parent=35 // pred_fallthru
          _
      $region36: #{tpu_custom_call.1} parent=5 // pred_fallthru
        _
      %p634 = scmp.le.s32.totalorder 2, %s20
      // Predicated region
      $region57: #{tpu_custom_call.1} parent=5 // pred_check
        %p635 = pneg %p634
      $region58: #{tpu_custom_call.1} parent=5 // pred_check_branch
        %637 = sbr.rel (%p635) target = $region60
      $region59: #{tpu_custom_call.1} parent=5 // pred_region
        %s638 = ssub.s32 %s20, 2
        // Predicated region
        $region61: #{tpu_custom_call.1} parent=59 // pred_check
          %p639 = pneg %p148
        $region62: #{tpu_custom_call.1} parent=59 // pred_check_branch
          %641 = sbr.rel (%p639) target = $region64
        $region63: #{tpu_custom_call.1} parent=59 // pred_region
          %s642 = sand.u32 %s133, 1
          %s643 = scalar_lea.sflag [#allocation4], %s642
          %s644 = sand.u32 %s133, 1
          %s645 = smul.addr %s644, 56
          %s646 = scalar_lea.vmem [#allocation10], %s645
          %647 = dma.done %s643, 896
        $region64: #{tpu_custom_call.1} parent=59 // pred_fallthru
          _
      $region60: #{tpu_custom_call.1} parent=5 // pred_fallthru
        _
    $region6: #{tpu_custom_call.1} parent=1 // loop_footer
      %s24 = sadd.s32 1, %s20
    $region7: #{tpu_custom_call.1} parent=1 // loop_footer_branch
      %19 = sbr.rel target = $region3
    $region8: #{tpu_custom_call.1} parent=1 // loop_exit
      _
    %648 = vsyncpa [#allocation3], 1
    %s649 = scalar_lea.sflag [#allocation3], 1
    %650 = vsyncpa %s649, 1
    %651 = vsyncpa [#allocation6], 1
    %s652 = scalar_lea.sflag [#allocation6], 1
    %653 = vsyncpa %s652, 1
    %654 = vsyncpa [#allocation9], 1
    %655 = vsyncpa [#allocation4], 1
    %s656 = scalar_lea.sflag [#allocation4], 1
    %657 = vsyncpa %s656, 1

</llo_original>
